<compile_context>
chip_gen: v7x
topology: tpu7x:2x2x1
jax: 0.10.0
libtpu: 0.0.40
codegen_flags: <defaults>
</compile_context>

<pallas_src>
import functools

import jax
import jax.numpy as jnp
from jax.experimental import pallas as pl
from jax.experimental.pallas import tpu as pltpu

_LANE = 128
_SUBLANE = 8


def _round_up(x, m):
    return ((x + m - 1) // m) * m


def _edge_predictor_kernel(x_ref, w1_ref, b1_ref, w2_ref, b2_ref, o_ref):
    # x:  [TB, 2E]      streamed per grid step (f32 or bf16)
    # w1: [2E, Hp]      VMEM-resident (f32 or bf16)
    # b1: [1,  Hp] f32  VMEM-resident
    # w2: [1,  Hp] f32  VMEM-resident row (transpose of fc2 weight, zero-padded)
    # b2: [1, 1]   f32  SMEM scalar
    # o:  [TB, 1]  f32
    h = jnp.dot(x_ref[...], w1_ref[...], preferred_element_type=jnp.float32)
    h = jnp.maximum(h + b1_ref[...], 0.0)  # f32 VPU epilogue (safe on v5e too)
    # fc2 (out_features == 1): per-lane multiply + cross-lane (XLU) reduce
    # instead of a 1-column MXU matmul.  Padded lanes contribute 0 (w2 is zero).
    logits = jnp.sum(h * w2_ref[...], axis=-1, keepdims=True) + b2_ref[0, 0]
    o_ref[...] = jax.nn.sigmoid(logits).astype(o_ref.dtype)


@functools.partial(
    jax.jit, static_argnames=("target_block_bytes", "block_rows", "compute_dtype"))
def edge_predictor_forward(x, w1, b1, w2, b2, *,
                           target_block_bytes=2 * 1024 * 1024,
                           block_rows=None,
                           compute_dtype=None):
    """Fused EdgePredictor forward.

    x:  [batch, embedding_dim * 2]
    w1: [2E, H]  (transpose of PyTorch fc1.weight)   b1: [1, H] or [H]
    w2: [H, 1]   (transpose of PyTorch fc2.weight)   b2: [1, 1] or [1]
    Returns [batch, 1] float32 probabilities.

    compute_dtype=None streams x in its own dtype (no standalone wrapper cast);
    pass bf16 x, or set compute_dtype=jnp.bfloat16 explicitly (accepting the
    extra cast pass), to halve streamed HBM bytes and use the bf16-native MXU.
    """
    batch, in_dim = x.shape
    hidden = w1.shape[1]

    if compute_dtype is None:
        compute_dtype = x.dtype          # never introduce a standalone cast of x
    compute_dtype = jnp.dtype(compute_dtype)
    itemsize = compute_dtype.itemsize

    # ---- pad hidden dim to a full 128-lane width (zero pad => result unchanged).
    hp = _round_up(hidden, _LANE)
    pad_h = hp - hidden
    w1p = jnp.pad(w1, ((0, 0), (0, pad_h))).astype(compute_dtype)
    b1p = jnp.pad(jnp.reshape(b1, (1, hidden)).astype(jnp.float32),
                  ((0, 0), (0, pad_h)))
    w2p = jnp.pad(jnp.reshape(w2, (1, hidden)).astype(jnp.float32),
                  ((0, 0), (0, pad_h)))
    b2s = jnp.reshape(b2, (1, 1)).astype(jnp.float32)
    xc = x if x.dtype == compute_dtype else x.astype(compute_dtype)

    # ---- batch tile: sized by bytes (~target_block_bytes of streamed x per
    #      step), multiple of 8 sublanes, never larger than the (rounded-down)
    #      batch so only the final block is ragged.  No wrapper-side padding.
    row_bytes = max(in_dim * itemsize, 1)
    tb = target_block_bytes // row_bytes
    if block_rows is not None:
        tb = block_rows
    tb = min(tb, max(_SUBLANE, (batch // _SUBLANE) * _SUBLANE))
    tb = max(_SUBLANE, (tb // _SUBLANE) * _SUBLANE)

    grid = (pl.cdiv(batch, tb),)

    # ---- VMEM budget: double-buffered x tiles + (double-buffered) resident
    #      weights + output tiles, with headroom.  Never below the common
    #      32 MiB scoped default (raises v5e's 16 MiB default when needed).
    x_tile_bytes = tb * in_dim * itemsize
    w1_bytes = in_dim * hp * itemsize
    vec_bytes = 2 * hp * 4                      # b1 row + w2 row
    out_tile_bytes = tb * 4
    needed = 2 * (x_tile_bytes + w1_bytes + vec_bytes + out_tile_bytes)
    vmem_limit = int(min(max(needed * 5 // 4 + (2 << 20), 32 << 20), 110 << 20))

    cost = pl.CostEstimate(
        flops=int(2 * batch * in_dim * hp + 4 * batch * hp),
        transcendentals=int(batch),
        bytes_accessed=int(batch * in_dim * itemsize      # streamed x
                           + in_dim * hp * itemsize       # resident w1
                           + 2 * hp * 4 + 4               # b1, w2 row, b2
                           + batch * 4),                  # output
    )

    out = pl.pallas_call(
        _edge_predictor_kernel,
        out_shape=jax.ShapeDtypeStruct((batch, 1), jnp.float32),
        grid_spec=pltpu.PrefetchScalarGridSpec(
            num_scalar_prefetch=0,
            grid=grid,
            in_specs=[
                pl.BlockSpec((tb, in_dim), lambda i: (i, 0)),   # x: streamed tiles
                # On v7x (64 MiB VMEM/TC) with very large hidden dims, consider
                # pipeline_mode=pl.Buffered(1) on the three resident specs below
                # to drop their second pipeline buffer.
                pl.BlockSpec((in_dim, hp), lambda i: (0, 0)),   # w1: VMEM-resident
                pl.BlockSpec((1, hp), lambda i: (0, 0)),        # b1: VMEM-resident
                pl.BlockSpec((1, hp), lambda i: (0, 0)),        # w2 row: resident
                pl.BlockSpec(memory_space=pltpu.SMEM),          # b2: SMEM scalar
            ],
            out_specs=pl.BlockSpec((tb, 1), lambda i: (i, 0)),
        ),
        compiler_params=pltpu.CompilerParams(
            dimension_semantics=("parallel",),      # shards batch across v7x TCs
            vmem_limit_bytes=vmem_limit,
        ),
        cost_estimate=cost,
    )(xc, w1p, b1p, w2p, b2s)

    return out


def init_edge_predictor_params(key, embedding_dim, hidden_dim):
    """nn.Linear-style U(-1/sqrt(fan_in), 1/sqrt(fan_in)); weights stored [in, out]."""
    in1 = embedding_dim * 2
    k1, k2, k3, k4 = jax.random.split(key, 4)
    bound1 = 1.0 / jnp.sqrt(in1)
    bound2 = 1.0 / jnp.sqrt(hidden_dim)
    w1 = jax.random.uniform(k1, (in1, hidden_dim), jnp.float32, -bound1, bound1)
    b1 = jax.random.uniform(k2, (1, hidden_dim), jnp.float32, -bound1, bound1)
    w2 = jax.random.uniform(k3, (hidden_dim, 1), jnp.float32, -bound2, bound2)
    b2 = jax.random.uniform(k4, (1, 1), jnp.float32, -bound2, bound2)
    return w1, b1, w2, b2


def reference_forward(x, w1, b1, w2, b2):
    h = jnp.maximum(x @ w1 + b1, 0.0)
    return jax.nn.sigmoid(h @ w2 + b2)


if __name__ == "__main__":
    embedding_dim = 16
    hidden_dim = 32
    batch = 8

    key = jax.random.PRNGKey(0)
    k_params, k_x, k_x2 = jax.random.split(key, 3)

    w1, b1, w2, b2 = init_edge_predictor_params(k_params, embedding_dim, hidden_dim)
    x = jax.random.normal(k_x, (batch, embedding_dim * 2), jnp.float32)
    ref = reference_forward(x, w1, b1, w2, b2)

    # f32 path, single tile, byte-sized default tiling.
    out = jax.block_until_ready(edge_predictor_forward(x, w1, b1, w2, b2))
    assert out.shape == (batch, 1)
    assert jnp.allclose(out, ref, atol=1e-5, rtol=1e-5)

    # Multi-tile grid with a ragged last block (batch not a multiple of the tile),
    # handled inside the kernel with no wrapper-side padding or slicing.
    batch2 = 50
    x2 = jax.random.normal(k_x2, (batch2, embedding_dim * 2), jnp.float32)
    out2 = jax.block_until_ready(
        edge_predictor_forward(x2, w1, b1, w2, b2, block_rows=16))
    ref2 = reference_forward(x2, w1, b1, w2, b2)
    assert out2.shape == (batch2, 1)
    assert jnp.allclose(out2, ref2, atol=1e-5, rtol=1e-5)

    # bf16 streaming: x is *already* bf16 at the call boundary (no standalone
    # wrapper cast); w1 follows x's dtype, accumulation + epilogue stay f32.
    out_bf16 = jax.block_until_ready(
        edge_predictor_forward(x.astype(jnp.bfloat16), w1, b1, w2, b2))
    assert out_bf16.shape == (batch, 1)
    assert jnp.allclose(out_bf16, ref, atol=2e-2)

    print("KERNEL_OK")
</pallas_src>

<mosaic_0001>
module attributes {stable_mosaic.version = 11 : i64} {
  func.func @_edge_predictor_kernel(%arg0: i32, %arg1: memref<8x32xf32, #tpu.memory_space<vmem>>, %arg2: memref<32x128xf32, #tpu.memory_space<vmem>>, %arg3: memref<1x128xf32, #tpu.memory_space<vmem>>, %arg4: memref<1x128xf32, #tpu.memory_space<vmem>>, %arg5: memref<1x1xf32, #tpu.memory_space<smem>>, %arg6: memref<8x1xf32, #tpu.memory_space<vmem>>) attributes {dimension_semantics = [#tpu.dimension_semantics<parallel>], iteration_bounds = array<i64: 1>, scalar_prefetch = 0 : i64, scratch_operands = 0 : i64, tpu.core_type = #tpu.core_type<tc>, window_params = [{transform_indices = @transform_0, window_bounds = array<i64: 8, 32>}, {pipeline_mode = #tpu.pipeline_mode<synchronous>, transform_indices = @transform_1, window_bounds = array<i64: 32, 128>}, {pipeline_mode = #tpu.pipeline_mode<synchronous>, transform_indices = @transform_2, window_bounds = array<i64: 1, 128>}, {pipeline_mode = #tpu.pipeline_mode<synchronous>, transform_indices = @transform_3, window_bounds = array<i64: 1, 128>}, {transform_indices = @transform_4, window_bounds = array<i64: 1, 1>}, {transform_indices = @transform_5, window_bounds = array<i64: 8, 1>}]} {
    %c0 = arith.constant 0 : index
    %c0_0 = arith.constant 0 : index
    %0 = vector.load %arg1[%c0, %c0_0] : memref<8x32xf32, #tpu.memory_space<vmem>>, vector<8x32xf32>
    %c0_1 = arith.constant 0 : index
    %c0_2 = arith.constant 0 : index
    %1 = vector.load %arg2[%c0_1, %c0_2] : memref<32x128xf32, #tpu.memory_space<vmem>>, vector<32x128xf32>
    %cst = arith.constant dense<0.000000e+00> : vector<8x128xf32>
    %2 = tpu.matmul %0, %1, %cst {dimension_numbers = #tpu.dot_dimension_numbers<[1], [0], [0], [1], [0, 0, 1, 1], [], []>} : vector<8x32xf32>, vector<32x128xf32>, vector<8x128xf32> -> vector<8x128xf32>
    %c0_3 = arith.constant 0 : index
    %c0_4 = arith.constant 0 : index
    %3 = vector.load %arg3[%c0_3, %c0_4] : memref<1x128xf32, #tpu.memory_space<vmem>>, vector<1x128xf32>
    %4 = vector.broadcast %3 : vector<1x128xf32> to vector<8x128xf32>
    %5 = arith.addf %2, %4 : vector<8x128xf32>
    %cst_5 = arith.constant 0.000000e+00 : f32
    %6 = vector.broadcast %cst_5 : f32 to vector<8x128xf32>
    %7 = arith.maximumf %5, %6 : vector<8x128xf32>
    %c0_6 = arith.constant 0 : index
    %c0_7 = arith.constant 0 : index
    %8 = vector.load %arg4[%c0_6, %c0_7] : memref<1x128xf32, #tpu.memory_space<vmem>>, vector<1x128xf32>
    %9 = vector.broadcast %8 : vector<1x128xf32> to vector<8x128xf32>
    %10 = arith.mulf %7, %9 : vector<8x128xf32>
    %cst_8 = arith.constant dense<0.000000e+00> : vector<8xf32>
    %11 = vector.multi_reduction <add>, %10, %cst_8 [1] : vector<8x128xf32> to vector<8xf32>
    %12 = vector.shape_cast %11 : vector<8xf32> to vector<8x1xf32>
    %c0_9 = arith.constant 0 : index
    %c0_10 = arith.constant 0 : index
    %13 = memref.load %arg5[%c0_9, %c0_10] : memref<1x1xf32, #tpu.memory_space<smem>>
    %14 = vector.broadcast %13 : f32 to vector<8x1xf32>
    %15 = arith.addf %12, %14 : vector<8x1xf32>
    %16 = arith.negf %15 : vector<8x1xf32>
    %17 = math.exp %16 : vector<8x1xf32>
    %cst_11 = arith.constant 1.000000e+00 : f32
    %18 = vector.broadcast %cst_11 : f32 to vector<8x1xf32>
    %19 = arith.addf %18, %17 : vector<8x1xf32>
    %20 = arith.divf %18, %19 : vector<8x1xf32>
    %c0_12 = arith.constant 0 : index
    %c0_13 = arith.constant 0 : index
    %21 = vector.load %arg6[%c0_12, %c0_13] : memref<8x1xf32, #tpu.memory_space<vmem>>, vector<8x1xf32>
    tpu.vector_store %arg6[%c0_12, %c0_13], %20 {strides = array<i32>} : memref<8x1xf32, #tpu.memory_space<vmem>>, vector<8x1xf32>,
    return
  }
  func.func @transform_0(%arg0: i32) -> (i32, i32) {
    %c0_i32 = arith.constant 0 : i32
    %c0_i32_0 = arith.constant 0 : i32
    return %arg0, %c0_i32 : i32, i32
  }
  func.func @transform_1(%arg0: i32) -> (i32, i32) {
    %c0_i32 = arith.constant 0 : i32
    %c0_i32_0 = arith.constant 0 : i32
    %c0_i32_1 = arith.constant 0 : i32
    return %c0_i32, %c0_i32_0 : i32, i32
  }
  func.func @transform_2(%arg0: i32) -> (i32, i32) {
    %c0_i32 = arith.constant 0 : i32
    %c0_i32_0 = arith.constant 0 : i32
    %c0_i32_1 = arith.constant 0 : i32
    return %c0_i32, %c0_i32_0 : i32, i32
  }
  func.func @transform_3(%arg0: i32) -> (i32, i32) {
    %c0_i32 = arith.constant 0 : i32
    %c0_i32_0 = arith.constant 0 : i32
    %c0_i32_1 = arith.constant 0 : i32
    return %c0_i32, %c0_i32_0 : i32, i32
  }
  func.func @transform_4(%arg0: i32) -> (i32, i32) {
    %c0_i32 = arith.constant 0 : i32
    %c0_i32_0 = arith.constant 0 : i32
    %c0_i32_1 = arith.constant 0 : i32
    return %c0_i32, %c0_i32_0 : i32, i32
  }
  func.func @transform_5(%arg0: i32) -> (i32, i32) {
    %c0_i32 = arith.constant 0 : i32
    %c0_i32_0 = arith.constant 0 : i32
    return %arg0, %c0_i32 : i32, i32
  }
}

</mosaic_0001>

<llo_original>
// kernel: edge_predictor_forward.1
$region0: #{edge_predictor_forward.1}
  #allocation0 [shape = 'u32[]', space=smem, size = 0x4, offset = 0x4, fixed_abs, tag = 'smem constant byte address 0x4 - core index']
  #allocation1 [shape = 'u32[144,128]{1,0:T(1,128)}', space=vmem, size = 0x12000, scoped, tag = 'internal scratch']
  #allocation2 [shape = 'f32[1,1]{1,0:T(1,128)S(6)}', space=smem, size = 0x200, scoped, tag = 'scoped memory for edge_predictor_forward.1']
  %s0 = inlined_call_operand.vmem [shape: f32[8,32], index: 0, kind: input, shape index: {}]
  %s1 = inlined_call_operand.vmem [shape: f32[32,128], index: 1, kind: input, shape index: {}]
  %s2 = inlined_call_operand.vmem [shape: f32[1,128], index: 2, kind: input, shape index: {}]
  %s3 = inlined_call_operand.vmem [shape: f32[1,128], index: 3, kind: input, shape index: {}]
  %s4 = inlined_call_operand.<no memory space> [shape: f32[1,1], index: 4, kind: input, shape index: {}]
  %s5 = inlined_call_operand.vmem [shape: f32[8,1], index: 5, kind: output, shape index: {}]
  %s6 = sld [smem:[#allocation0]]
  $region30: #{edge_predictor_forward.1} parent=0
    _
  %s8 = ssub.s32 1, %s6
  %s9 = scalar_select 0, %s8, %s6
  %10 = sst [smem:[#allocation2]] %s4
  // Predicated region
  $region2: #{edge_predictor_forward.1} parent=0 // pred_check
    _
  $region3: #{edge_predictor_forward.1} parent=0 // pred_check_branch
    %12 = sbr.rel (0) target = $region5
  $region4: #{edge_predictor_forward.1} parent=0 // pred_region
    _
  $region5: #{edge_predictor_forward.1} parent=0 // pred_fallthru
    _
  // Predicated region
  $region6: #{edge_predictor_forward.1} parent=0 // pred_check
    _
  $region7: #{edge_predictor_forward.1} parent=0 // pred_check_branch
    %14 = sbr.rel (0) target = $region9
  $region8: #{edge_predictor_forward.1} parent=0 // pred_region
    _
  $region9: #{edge_predictor_forward.1} parent=0 // pred_fallthru
    _
  // Predicated region
  $region10: #{edge_predictor_forward.1} parent=0 // pred_check
    _
  $region11: #{edge_predictor_forward.1} parent=0 // pred_check_branch
    %16 = sbr.rel (0) target = $region13
  $region12: #{edge_predictor_forward.1} parent=0 // pred_region
    _
  $region13: #{edge_predictor_forward.1} parent=0 // pred_fallthru
    _
  // Predicated region
  $region14: #{edge_predictor_forward.1} parent=0 // pred_check
    _
  $region15: #{edge_predictor_forward.1} parent=0 // pred_check_branch
    %18 = sbr.rel (0) target = $region17
  $region16: #{edge_predictor_forward.1} parent=0 // pred_region
    _
  $region17: #{edge_predictor_forward.1} parent=0 // pred_fallthru
    _
  // Predicated region
  $region18: #{edge_predictor_forward.1} parent=0 // pred_check
    _
  $region19: #{edge_predictor_forward.1} parent=0 // pred_check_branch
    %20 = sbr.rel (0) target = $region21
  $region20: #{edge_predictor_forward.1} parent=0 // pred_region
    _
  $region21: #{edge_predictor_forward.1} parent=0 // pred_fallthru
    _
  %v21 = vld [vmem:[%s0] sm:$0xff]
  %v22 = vld [vmem:[%s1] sm:$0xff]
  %v23 = vld [vmem:[%s1 + $0x8] sm:$0xff]
  %v24 = vld [vmem:[%s1 + $0x10] sm:$0xff]
  %v25 = vld [vmem:[%s1 + $0x18] sm:$0xff]
  %v26 = vld [vmem:[%s2] sm:$0x1]
  %v28 = vlaneseq
  %v29 = vshrl.u32 %v28, 7
  %v30 = vsub.s32 0, %v29
  %v31 = vrot.slane %v26, %v30
  %vm33 = vcmask 261120
  %v35 = vsel %vm33, %v21, 0
  %37 = vmatprep.subr.mxu0 0.0
  %38 = vmatpush1.msra.mxu0 %v22
  %39 = vmatprep.subr.mxu0 0.0
  %40 = vmatpush1.msra.mxu0 %v23
  %41 = vmatprep.subr.mxu0 0.0
  %42 = vmatpush1.msra.mxu0 %v24
  %43 = vmatprep.subr.mxu0 0.0
  %44 = vmatpush1.msra.mxu0 %v25
  %45 = vmatprep.subr.mxu0 0.0
  %46 = vmatpush1.msra.mxu0 0.0
  %47 = vmatprep.subr.mxu0 0.0
  %48 = vmatpush1.msra.mxu0 0.0
  %49 = vmatprep.subr.mxu0 0.0
  %50 = vmatpush1.msra.mxu0 0.0
  %51 = vmatprep.subr.mxu0 0.0
  %52 = vmatpush1.msra.mxu0 0.0
  %53 = vmatprep.subr.mxu0 0.0
  %54 = vmatpush1.msra.mxu0 0.0
  %55 = vmatprep.subr.mxu0 0.0
  %56 = vmatpush1.msra.mxu0 0.0
  %57 = vmatprep.subr.mxu0 0.0
  %58 = vmatpush1.msra.mxu0 0.0
  %59 = vmatprep.subr.mxu0 0.0
  %60 = vmatpush1.msra.mxu0 0.0
  %61 = vmatprep.subr.mxu0 0.0
  %62 = vmatpush1.msra.mxu0 0.0
  %63 = vmatprep.subr.mxu0 0.0
  %64 = vmatpush1.msra.mxu0 0.0
  %65 = vmatprep.subr.mxu0 0.0
  %66 = vmatpush1.msra.mxu0 0.0
  %67 = vmatprep.subr.mxu0 0.0
  %68 = vmatpush1.msra.mxu0 0.0
  %69 = vmatprep.subr.mxu0 0.0
  %70 = vmatpush1.msra.mxu0 0.0
  %71 = vmatprep.subr.mxu0 0.0
  %72 = vmatpush1.msra.mxu0 0.0
  %73 = vmatprep.subr.mxu0 0.0
  %74 = vmatpush1.msra.mxu0 0.0
  %75 = vmatprep.subr.mxu0 0.0
  %76 = vmatpush1.msra.mxu0 0.0
  %77 = vmatprep.subr.mxu0 0.0
  %78 = vmatpush1.msra.mxu0 0.0
  %79 = vmatprep.subr.mxu0 0.0
  %80 = vmatpush1.msra.mxu0 0.0
  %81 = vmatprep.subr.mxu0 0.0
  %82 = vmatpush1.msra.mxu0 0.0
  %83 = vmatprep.subr.mxu0 0.0
  %84 = vmatpush1.msra.mxu0 0.0
  %85 = vmatprep.subr.mxu0 0.0
  %86 = vmatpush1.msra.mxu0 0.0
  %87 = vmatprep.subr.mxu0 0.0
  %88 = vmatpush1.msra.mxu0 0.0
  %89 = vmatprep.subr.mxu0 0.0
  %90 = vmatpush1.msra.mxu0 0.0
  %91 = vmatprep.subr.mxu0 0.0
  %92 = vmatpush1.msra.mxu0 0.0
  %93 = vmatprep.subr.mxu0 0.0
  %94 = vmatpush1.msra.mxu0 0.0
  %95 = vmatprep.subr.mxu0 0.0
  %96 = vmatpush1.msra.mxu0 0.0
  %97 = vmatprep.subr.mxu0 0.0
  %98 = vmatpush1.msra.mxu0 0.0
  %99 = vmatprep.subr.mxu0 0.0
  %100 = vmatpush1.msra.mxu0 0.0
  %101 = vmatprep.mubr.f32.mxu0 0.0
  %102 = vmatmul.mubr.f32.gmra.mrb[0].mxu0 %v35
  %v103 = vpop.f32.mrb[0].mxu0
  %v104 = vadd.f32 %v31, %v103
  %v105 = vpop.f32.mrb[0].mxu0
  %106 = vdwg.mxu0
  %v107 = vmax.f32 %v104, 0.0
  %v108 = vld [vmem:[%s3] sm:$0x1]
  %v110 = vlaneseq
  %v111 = vshrl.u32 %v110, 7
  %v112 = vsub.s32 0, %v111
  %v113 = vrot.slane %v108, %v112
  %v115 = vmul.f32 %v107, %v113
  %116 = vadd.xlane.f32.xlu0 %v115
  %v117 = vpop.xlane.xlu0 %116
  %s118 = sld [smem:[#allocation2]]
  %v119 = vstv %s118
  %v120 = vadd.f32 %v117, %v119
  %v121 = vxor.u32 %v120, 2147483648
  %v122 = vmul.f32 %v121, 1.442695
  %v123 = vpow.pop %v122
  %v124 = vadd.f32 %v123, 1.0
  %v125 = vrcp.pop %v124
  %v126 = vmul.f32 1.0, %v125
  %vm127 = vcmask 7168
  %128 = vst.msk [vmem:[%s5] sm:$0xff] %vm127, %v126
  // Predicated region
  $region22: #{edge_predictor_forward.1} parent=0 // pred_check
    _
  $region23: #{edge_predictor_forward.1} parent=0 // pred_check_branch
    %130 = sbr.rel (0) target = $region25
  $region24: #{edge_predictor_forward.1} parent=0 // pred_region
    _
  $region25: #{edge_predictor_forward.1} parent=0 // pred_fallthru
    _
  // Predicated region
  $region26: #{edge_predictor_forward.1} parent=0 // pred_check
    _
  $region27: #{edge_predictor_forward.1} parent=0 // pred_check_branch
    %132 = sbr.rel (0) target = $region29
  $region28: #{edge_predictor_forward.1} parent=0 // pred_region
    _
  $region29: #{edge_predictor_forward.1} parent=0 // pred_fallthru
    _

</llo_original>
